<compile_context>
chip_gen: v6e
topology: v6e:2x2x1
jax: 0.10.0
libtpu: 0.0.40
codegen_flags: <defaults>
</compile_context>

<pallas_src>
import jax
import jax.numpy as jnp
from jax.experimental import pallas as pl
from jax.experimental.pallas import tpu as pltpu

LANE = 128
VMEM_BUDGET = 30 * 1024 * 1024   # conservative per-step working-set budget
VMEM_LIMIT = 48 * 1024 * 1024    # scoped-VMEM cap (safe on v5e/v6e/v7x)


def _round_up(v, m):
    return ((v + m - 1) // m) * m


def _vmem_estimate(B, HW_T, Kc1, Cpad, Epad):
    """Rough per-grid-step VMEM working set (bytes), incl. lane/sublane padding."""
    cols_blk = 2 * B * _round_up(HW_T, 16) * _round_up(Kc1, LANE) * 2  # bf16, 2x buffered
    y_tmp = B * HW_T * Cpad * 4                                        # f32 conv activations
    acc = _round_up(B, 8) * Cpad * 4                                   # pooled accumulator
    w1 = _round_up(Kc1, 16) * Cpad * 2
    w2 = Cpad * Epad * 2
    b2 = 8 * Epad * 4
    out_blk = 2 * _round_up(B, 8) * Epad * 4
    return cols_blk + y_tmp + acc + w1 + w2 + b2 + out_blk


def feature_extraction_backbone(x_nchw, w1, b1, w2, b2):
    """Pallas implementation of FeatureExtractionBackbone.forward.

    x_nchw: (N, Cin, H, W) float32  (PyTorch NCHW convention)
    w1:     (3, 3, Cin, Cmid)  conv weight (HWIO)
    b1:     (Cmid,)
    w2:     (Cmid, E)          projection head
    b2:     (E,)
    returns (N, E)  -- matches torch.squeeze of the (N, E, 1, 1) backbone output
    """
    N, Cin, H, W = x_nchw.shape
    Cmid = w1.shape[-1]
    E = w2.shape[-1]
    HW = H * W
    Kc = 9 * Cin
    Kc1 = Kc + 1                                  # + folded-bias ones column

    # Lane-dense channel padding (zero channels provably contribute 0).
    Cpad = _round_up(max(Cmid, LANE), LANE)
    Epad = _round_up(max(E, LANE), LANE)

    f32, bf16 = jnp.float32, jnp.bfloat16

    # ---- VMEM-aware tile selection ----------------------------------------
    HW_T = min(_round_up(HW, 8), 2048)            # sublane-aligned HW tile
    B = min(N, 64)
    if B < N:                                     # multi-block batch -> keep blocks 8-aligned
        B = max(8, (B // 8) * 8)
    while _vmem_estimate(B, HW_T, Kc1, Cpad, Epad) > VMEM_BUDGET and (B > 8 or HW_T > 8):
        if B > 8:
            B = max(8, (B // 2 // 8) * 8)
        else:
            HW_T = max(8, _round_up(HW_T // 2, 8))

    G = -(-N // B)
    Npad = G * B
    HWG = -(-HW // HW_T)
    HWpad = HWG * HW_T
    inv_hw = 1.0 / float(HW)

    # ---- one-time operand prep (fused by XLA; kernel sees lane-friendly data)
    x = jnp.transpose(x_nchw, (0, 2, 3, 1)).astype(f32)                 # NHWC
    xp = jnp.pad(x, ((0, 0), (1, 1), (1, 1), (0, 0)))                   # 3x3 SAME halo
    patches = [xp[:, dy:dy + H, dx:dx + W, :] for dy in range(3) for dx in range(3)]
    cols = jnp.concatenate(patches, axis=-1).reshape(N, HW, Kc)         # im2col, tap-major
    ones = jnp.ones((N, HW, 1), f32)                                    # folded conv bias
    cols = jnp.concatenate([cols, ones], axis=-1).astype(bf16)          # (N, HW, Kc1)
    if Npad != N or HWpad != HW:
        # Padded rows are all-zero (incl. the ones column) -> relu(0)=0 -> they
        # add nothing to the pooled sum; padded batch rows are sliced off below.
        cols = jnp.pad(cols, ((0, Npad - N), (0, HWpad - HW), (0, 0)))

    w1p = jnp.zeros((Kc1, Cpad), bf16)
    w1p = w1p.at[:Kc, :Cmid].set(w1.reshape(Kc, Cmid).astype(bf16))
    w1p = w1p.at[Kc, :Cmid].set(b1.astype(bf16))                        # bias row
    w2p = jnp.zeros((Cpad, Epad), bf16).at[:Cmid, :E].set(w2.astype(bf16))
    b2p = jnp.zeros((1, Epad), f32).at[:, :E].set(b2.astype(f32).reshape(1, E))

    def kernel(cols_ref, w1_ref, w2_ref, b2_ref, o_ref, acc_ref):
        # cols_ref: (B, HW_T, Kc1) bf16   im2col patches (+ ones column)
        # w1_ref:   (Kc1, Cpad)    bf16   fused 3x3 conv weights + bias row
        # w2_ref:   (Cpad, Epad)   bf16   projection head
        # b2_ref:   (1, Epad)      f32
        # o_ref:    (B, Epad)      f32    lane-dense output slab
        # acc_ref:  (B, Cpad)      f32    pooled-sum accumulator (scratch)
        hw = pl.program_id(1)

        @pl.when(hw == 0)
        def _():
            acc_ref[...] = jnp.zeros_like(acc_ref)

        # 3x3 conv (+ bias) as ONE MXU matmul: (B*HW_T, Kc1) @ (Kc1, Cpad).
        cols2d = cols_ref[...].reshape(B * HW_T, Kc1)      # leading-dim merge: free
        y = jnp.dot(cols2d, w1_ref[...], preferred_element_type=jnp.float32)
        y = jnp.maximum(y, 0.0)                            # ReLU only (bias folded)

        # Partial global-average-pool: cross-sublane sum on the XLU.
        acc_ref[...] += y.reshape(B, HW_T, Cpad).sum(axis=1)

        @pl.when(hw == pl.num_programs(1) - 1)
        def _():
            pooled = (acc_ref[...] * inv_hw).astype(jnp.bfloat16)
            emb = jnp.dot(pooled, w2_ref[...],
                          preferred_element_type=jnp.float32) + b2_ref[...]
            o_ref[...] = emb.astype(o_ref.dtype)

    out = pl.pallas_call(
        kernel,
        out_shape=jax.ShapeDtypeStruct((Npad, Epad), f32),
        grid_spec=pltpu.PrefetchScalarGridSpec(
            num_scalar_prefetch=0,
            grid=(G, HWG),
            in_specs=[
                pl.BlockSpec((B, HW_T, Kc1), lambda i, hw: (i, hw, 0)),
                # weights: constant index_map -> VMEM-resident across the grid
                pl.BlockSpec((Kc1, Cpad), lambda i, hw: (0, 0)),
                pl.BlockSpec((Cpad, Epad), lambda i, hw: (0, 0)),
                pl.BlockSpec((1, Epad), lambda i, hw: (0, 0)),
            ],
            out_specs=pl.BlockSpec((B, Epad), lambda i, hw: (i, 0)),
            scratch_shapes=[pltpu.VMEM((B, Cpad), jnp.float32)],
        ),
        compiler_params=pltpu.CompilerParams(
            dimension_semantics=("parallel", "arbitrary"),
            vmem_limit_bytes=VMEM_LIMIT),
    )(cols, w1p, w2p, b2p)

    # torch.squeeze: (N, E, 1, 1) -> (N, E); drop batch/channel padding.
    return out[:N, :E]


def _reference(x_nchw, w1, b1, w2, b2):
    # Pure-JAX reference of the same backbone, mirroring the kernel's MXU
    # precision (bf16 operands, f32 accumulation).
    f32, bf16 = jnp.float32, jnp.bfloat16
    x = jnp.transpose(x_nchw, (0, 2, 3, 1)).astype(bf16).astype(f32)
    w1r = w1.astype(bf16).astype(f32)
    y = jax.lax.conv_general_dilated(
        x, w1r, window_strides=(1, 1), padding="SAME",
        dimension_numbers=("NHWC", "HWIO", "NHWC"),
        precision=jax.lax.Precision.HIGHEST)
    y = jnp.maximum(y + b1.astype(bf16).astype(f32), 0.0)
    pooled = jnp.mean(y, axis=(1, 2))
    proj = jnp.dot(pooled.astype(bf16).astype(f32), w2.astype(bf16).astype(f32),
                   precision=jax.lax.Precision.HIGHEST)
    return proj + b2


if __name__ == "__main__":
    N, Cin, H, W = 2, 4, 16, 16
    Cmid, E = 32, 32

    key = jax.random.PRNGKey(0)
    kx, k1, k2, k3, k4 = jax.random.split(key, 5)

    x = jax.random.normal(kx, (N, Cin, H, W), jnp.float32)
    w1 = jax.random.normal(k1, (3, 3, Cin, Cmid), jnp.float32) * 0.1
    b1 = jax.random.normal(k2, (Cmid,), jnp.float32) * 0.1
    w2 = jax.random.normal(k3, (Cmid, E), jnp.float32) * 0.1
    b2 = jax.random.normal(k4, (E,), jnp.float32) * 0.1

    fwd = jax.jit(feature_extraction_backbone)
    out = jax.block_until_ready(fwd(x, w1, b1, w2, b2))

    ref = _reference(x, w1, b1, w2, b2)
    assert out.shape == (N, E)
    err = float(jnp.max(jnp.abs(out - ref)))
    assert jnp.allclose(out, ref, atol=2e-2, rtol=2e-2), err

    print("KERNEL_OK")
</pallas_src>

<mosaic_0001>
module attributes {stable_mosaic.version = 11 : i64} {
  func.func @kernel(%arg0: i32, %arg1: i32, %arg2: memref<2x256x37xbf16, #tpu.memory_space<vmem>>, %arg3: memref<37x128xbf16, #tpu.memory_space<vmem>>, %arg4: memref<128x128xbf16, #tpu.memory_space<vmem>>, %arg5: memref<1x128xf32, #tpu.memory_space<vmem>>, %arg6: memref<2x128xf32, #tpu.memory_space<vmem>>, %arg7: memref<2x128xf32, #tpu.memory_space<vmem>>) attributes {dimension_semantics = [#tpu.dimension_semantics<parallel>, #tpu.dimension_semantics<arbitrary>], iteration_bounds = array<i64: 1, 1>, scalar_prefetch = 0 : i64, scratch_operands = 1 : i64, tpu.core_type = #tpu.core_type<tc>, window_params = [{transform_indices = @transform_0, window_bounds = array<i64: 2, 256, 37>}, {pipeline_mode = #tpu.pipeline_mode<synchronous>, transform_indices = @transform_1, window_bounds = array<i64: 37, 128>}, {pipeline_mode = #tpu.pipeline_mode<synchronous>, transform_indices = @transform_2, window_bounds = array<i64: 128, 128>}, {pipeline_mode = #tpu.pipeline_mode<synchronous>, transform_indices = @transform_3, window_bounds = array<i64: 1, 128>}, {transform_indices = @transform_4, window_bounds = array<i64: 2, 128>}]} {
    %c0_i32 = arith.constant 0 : i32
    %0 = arith.cmpi eq, %arg1, %c0_i32 : i32
    %1 = arith.extui %0 : i1 to i32
    %c0_i32_0 = arith.constant 0 : i32
    %2 = arith.cmpi ne, %1, %c0_i32_0 : i32
    scf.if %2 {
      %cst_13 = arith.constant 0.000000e+00 : f32
      %17 = vector.broadcast %cst_13 : f32 to vector<2x128xf32>
      %c0_14 = arith.constant 0 : index
      %c0_15 = arith.constant 0 : index
      %18 = vector.load %arg7[%c0_14, %c0_15] : memref<2x128xf32, #tpu.memory_space<vmem>>, vector<2x128xf32>
      tpu.vector_store %arg7[%c0_14, %c0_15], %17 {strides = array<i32>} : memref<2x128xf32, #tpu.memory_space<vmem>>, vector<2x128xf32>,
    } else {
    }
    %c0 = arith.constant 0 : index
    %c0_1 = arith.constant 0 : index
    %c0_2 = arith.constant 0 : index
    %3 = vector.load %arg2[%c0, %c0_1, %c0_2] : memref<2x256x37xbf16, #tpu.memory_space<vmem>>, vector<2x256x37xbf16>
    %4 = vector.shape_cast %3 : vector<2x256x37xbf16> to vector<512x37xbf16>
    %c0_3 = arith.constant 0 : index
    %c0_4 = arith.constant 0 : index
    %5 = vector.load %arg3[%c0_3, %c0_4] : memref<37x128xbf16, #tpu.memory_space<vmem>>, vector<37x128xbf16>
    %cst = arith.constant dense<0.000000e+00> : vector<512x128xf32>
    %6 = tpu.matmul %4, %5, %cst {dimension_numbers = #tpu.dot_dimension_numbers<[1], [0], [0], [1], [0, 0, 1, 1], [], []>} : vector<512x37xbf16>, vector<37x128xbf16>, vector<512x128xf32> -> vector<512x128xf32>
    %cst_5 = arith.constant 0.000000e+00 : f32
    %7 = vector.broadcast %cst_5 : f32 to vector<512x128xf32>
    %8 = arith.maximumf %6, %7 : vector<512x128xf32>
    %c0_6 = arith.constant 0 : index
    %c0_7 = arith.constant 0 : index
    %9 = vector.load %arg7[%c0_6, %c0_7] : memref<2x128xf32, #tpu.memory_space<vmem>>, vector<2x128xf32>
    %10 = vector.shape_cast %8 : vector<512x128xf32> to vector<2x256x128xf32>
    %cst_8 = arith.constant dense<0.000000e+00> : vector<2x128xf32>
    %11 = vector.multi_reduction <add>, %10, %cst_8 [1] : vector<2x256x128xf32> to vector<2x128xf32>
    %12 = arith.addf %9, %11 : vector<2x128xf32>
    %c0_9 = arith.constant 0 : index
    %c0_10 = arith.constant 0 : index
    %13 = vector.load %arg7[%c0_9, %c0_10] : memref<2x128xf32, #tpu.memory_space<vmem>>, vector<2x128xf32>
    tpu.vector_store %arg7[%c0_9, %c0_10], %12 {strides = array<i32>} : memref<2x128xf32, #tpu.memory_space<vmem>>, vector<2x128xf32>,
    %c0_i32_11 = arith.constant 0 : i32
    %14 = arith.cmpi eq, %arg1, %c0_i32_11 : i32
    %15 = arith.extui %14 : i1 to i32
    %c0_i32_12 = arith.constant 0 : i32
    %16 = arith.cmpi ne, %15, %c0_i32_12 : i32
    scf.if %16 {
      %c0_13 = arith.constant 0 : index
      %c0_14 = arith.constant 0 : index
      %17 = vector.load %arg7[%c0_13, %c0_14] : memref<2x128xf32, #tpu.memory_space<vmem>>, vector<2x128xf32>
      %cst_15 = arith.constant 3.906250e-03 : f32
      %18 = vector.broadcast %cst_15 : f32 to vector<2x128xf32>
      %19 = arith.mulf %17, %18 : vector<2x128xf32>
      %20 = arith.truncf %19 : vector<2x128xf32> to vector<2x128xbf16>
      %c0_16 = arith.constant 0 : index
      %c0_17 = arith.constant 0 : index
      %21 = vector.load %arg4[%c0_16, %c0_17] : memref<128x128xbf16, #tpu.memory_space<vmem>>, vector<128x128xbf16>
      %cst_18 = arith.constant dense<0.000000e+00> : vector<2x128xf32>
      %22 = tpu.matmul %20, %21, %cst_18 {dimension_numbers = #tpu.dot_dimension_numbers<[1], [0], [0], [1], [0, 0, 1, 1], [], []>} : vector<2x128xbf16>, vector<128x128xbf16>, vector<2x128xf32> -> vector<2x128xf32>
      %c0_19 = arith.constant 0 : index
      %c0_20 = arith.constant 0 : index
      %23 = vector.load %arg5[%c0_19, %c0_20] : memref<1x128xf32, #tpu.memory_space<vmem>>, vector<1x128xf32>
      %24 = vector.broadcast %23 : vector<1x128xf32> to vector<2x128xf32>
      %25 = arith.addf %22, %24 : vector<2x128xf32>
      %c0_21 = arith.constant 0 : index
      %c0_22 = arith.constant 0 : index
      %26 = vector.load %arg6[%c0_21, %c0_22] : memref<2x128xf32, #tpu.memory_space<vmem>>, vector<2x128xf32>
      tpu.vector_store %arg6[%c0_21, %c0_22], %25 {strides = array<i32>} : memref<2x128xf32, #tpu.memory_space<vmem>>, vector<2x128xf32>,
    } else {
    }
    return
  }
  func.func @transform_0(%arg0: i32, %arg1: i32) -> (i32, i32, i32) {
    %c0_i32 = arith.constant 0 : i32
    %c0_i32_0 = arith.constant 0 : i32
    return %arg0, %arg1, %c0_i32 : i32, i32, i32
  }
  func.func @transform_1(%arg0: i32, %arg1: i32) -> (i32, i32) {
    %c0_i32 = arith.constant 0 : i32
    %c0_i32_0 = arith.constant 0 : i32
    %c0_i32_1 = arith.constant 0 : i32
    return %c0_i32, %c0_i32_0 : i32, i32
  }
  func.func @transform_2(%arg0: i32, %arg1: i32) -> (i32, i32) {
    %c0_i32 = arith.constant 0 : i32
    %c0_i32_0 = arith.constant 0 : i32
    %c0_i32_1 = arith.constant 0 : i32
    return %c0_i32, %c0_i32_0 : i32, i32
  }
  func.func @transform_3(%arg0: i32, %arg1: i32) -> (i32, i32) {
    %c0_i32 = arith.constant 0 : i32
    %c0_i32_0 = arith.constant 0 : i32
    %c0_i32_1 = arith.constant 0 : i32
    return %c0_i32, %c0_i32_0 : i32, i32
  }
  func.func @transform_4(%arg0: i32, %arg1: i32) -> (i32, i32) {
    %c0_i32 = arith.constant 0 : i32
    %c0_i32_0 = arith.constant 0 : i32
    return %arg0, %c0_i32 : i32, i32
  }
}

</mosaic_0001>

<llo_original>
// kernel: feature_extraction_backbone.1
$region0: #{feature_extraction_backbone.1}
  #allocation0 [shape = 'u32[]', space=smem, size = 0x4, offset = 0x4, fixed_abs, tag = 'smem constant byte address 0x4 - core index']
  #allocation1 [shape = 'u32[144,128]{1,0:T(1,128)}', space=vmem, size = 0x12000, scoped, tag = 'internal scratch']
  #allocation2 [shape = 'f32[2,128]{1,0:T(2,128)}', space=vmem, size = 0x400, scoped, tag = 'scratch operand']
  %s0 = inlined_call_operand.vmem [shape: bf16[2,256,37], index: 0, kind: input, shape index: {}]
  %s1 = inlined_call_operand.vmem [shape: bf16[37,128], index: 1, kind: input, shape index: {}]
  %s2 = inlined_call_operand.vmem [shape: bf16[128,128], index: 2, kind: input, shape index: {}]
  %s3 = inlined_call_operand.vmem [shape: f32[1,128], index: 3, kind: input, shape index: {}]
  %s4 = inlined_call_operand.hbm [shape: f32[2,128], index: 4, kind: output, shape index: {}]
  %s5 = sld [smem:[#allocation0]]
  $region34: #{feature_extraction_backbone.1} parent=0
    _
  %s7 = ssub.s32 1, %s5
  %s8 = scalar_select 0, %s7, %s5
  $region1: #{feature_extraction_backbone.1} parent=0
    #allocation3 [shape = 'u8[1024]{0}', space=vmem, size = 0x400, scoped, tag = 'output window, operand 0, single buffered']
    #allocation4 [shape = 's32[1]{0}', space=sflag, size = 0x4, scoped, tag = 'scoped memory for feature_extraction_backbone.1']
    %9 = vsyncpa [#allocation4], 0
    // Predicated region
    $region2: #{feature_extraction_backbone.1} parent=1 // pred_check
      _
    $region3: #{feature_extraction_backbone.1} parent=1 // pred_check_branch
      %11 = sbr.rel (0) target = $region5
    $region4: #{feature_extraction_backbone.1} parent=1 // pred_region
      _
    $region5: #{feature_extraction_backbone.1} parent=1 // pred_fallthru
      _
    // Predicated region
    $region6: #{feature_extraction_backbone.1} parent=1 // pred_check
      _
    $region7: #{feature_extraction_backbone.1} parent=1 // pred_check_branch
      %13 = sbr.rel (0) target = $region9
    $region8: #{feature_extraction_backbone.1} parent=1 // pred_region
      _
    $region9: #{feature_extraction_backbone.1} parent=1 // pred_fallthru
      _
    // Predicated region
    $region10: #{feature_extraction_backbone.1} parent=1 // pred_check
      _
    $region11: #{feature_extraction_backbone.1} parent=1 // pred_check_branch
      %15 = sbr.rel (0) target = $region13
    $region12: #{feature_extraction_backbone.1} parent=1 // pred_region
      _
    $region13: #{feature_extraction_backbone.1} parent=1 // pred_fallthru
      _
    // Predicated region
    $region14: #{feature_extraction_backbone.1} parent=1 // pred_check
      _
    $region15: #{feature_extraction_backbone.1} parent=1 // pred_check_branch
      %17 = sbr.rel (0) target = $region17
    $region16: #{feature_extraction_backbone.1} parent=1 // pred_region
      _
    $region17: #{feature_extraction_backbone.1} parent=1 // pred_fallthru
      _
    %p19 = scmp.eq.s32.totalorder 0, 0
    // Predicated region
    $region18: #{feature_extraction_backbone.1} parent=1 // pred_check
      %p20 = pneg %p19
    $region19: #{feature_extraction_backbone.1} parent=1 // pred_check_branch
      %22 = sbr.rel (%p20) target = $region21
    $region20: #{feature_extraction_backbone.1} parent=1 // pred_region
      %23 = vst [vmem:[#allocation2] sm:$0x3] 0.0
    $region21: #{feature_extraction_backbone.1} parent=1 // pred_fallthru
      _
    %v24 = vld [vmem:[%s0] sm:$0xf]
    %v25 = vld [vmem:[%s0 + $0x4] sm:$0xf]
    %v26 = vld [vmem:[%s0 + $0x8] sm:$0xf]
    %v27 = vld [vmem:[%s0 + $0xc] sm:$0xf]
    %v28 = vld [vmem:[%s0 + $0x10] sm:$0xf]
    %v29 = vld [vmem:[%s0 + $0x14] sm:$0xf]
    %v30 = vld [vmem:[%s0 + $0x18] sm:$0xf]
    %v31 = vld [vmem:[%s0 + $0x1c] sm:$0xf]
    %v32 = vld [vmem:[%s0 + $0x20] sm:$0xf]
    %v33 = vld [vmem:[%s0 + $0x24] sm:$0xf]
    %v34 = vld [vmem:[%s0 + $0x28] sm:$0xf]
    %v35 = vld [vmem:[%s0 + $0x2c] sm:$0xf]
    %v36 = vld [vmem:[%s0 + $0x30] sm:$0xf]
    %v37 = vld [vmem:[%s0 + $0x34] sm:$0xf]
    %v38 = vld [vmem:[%s0 + $0x38] sm:$0xf]
    %v39 = vld [vmem:[%s0 + $0x3c] sm:$0xf]
    %v40 = vld [vmem:[%s0 + $0x40] sm:$0xf]
    %v41 = vld [vmem:[%s0 + $0x44] sm:$0xf]
    %v42 = vld [vmem:[%s0 + $0x48] sm:$0xf]
    %v43 = vld [vmem:[%s0 + $0x4c] sm:$0xf]
    %v44 = vld [vmem:[%s0 + $0x50] sm:$0xf]
    %v45 = vld [vmem:[%s0 + $0x54] sm:$0xf]
    %v46 = vld [vmem:[%s0 + $0x58] sm:$0xf]
    %v47 = vld [vmem:[%s0 + $0x5c] sm:$0xf]
    %v48 = vld [vmem:[%s0 + $0x60] sm:$0xf]
    %v49 = vld [vmem:[%s0 + $0x64] sm:$0xf]
    %v50 = vld [vmem:[%s0 + $0x68] sm:$0xf]
    %v51 = vld [vmem:[%s0 + $0x6c] sm:$0xf]
    %v52 = vld [vmem:[%s0 + $0x70] sm:$0xf]
    %v53 = vld [vmem:[%s0 + $0x74] sm:$0xf]
    %v54 = vld [vmem:[%s0 + $0x78] sm:$0xf]
    %v55 = vld [vmem:[%s0 + $0x7c] sm:$0xf]
    %v56 = vld [vmem:[%s0 + $0x80] sm:$0xf]
    %v57 = vld [vmem:[%s0 + $0x84] sm:$0xf]
    %v58 = vld [vmem:[%s0 + $0x88] sm:$0xf]
    %v59 = vld [vmem:[%s0 + $0x8c] sm:$0xf]
    %v60 = vld [vmem:[%s0 + $0x90] sm:$0xf]
    %v61 = vld [vmem:[%s0 + $0x94] sm:$0xf]
    %v62 = vld [vmem:[%s0 + $0x98] sm:$0xf]
    %v63 = vld [vmem:[%s0 + $0x9c] sm:$0xf]
    %v64 = vld [vmem:[%s0 + $0xa0] sm:$0xf]
    %v65 = vld [vmem:[%s0 + $0xa4] sm:$0xf]
    %v66 = vld [vmem:[%s0 + $0xa8] sm:$0xf]
    %v67 = vld [vmem:[%s0 + $0xac] sm:$0xf]
    %v68 = vld [vmem:[%s0 + $0xb0] sm:$0xf]
    %v69 = vld [vmem:[%s0 + $0xb4] sm:$0xf]
    %v70 = vld [vmem:[%s0 + $0xb8] sm:$0xf]
    %v71 = vld [vmem:[%s0 + $0xbc] sm:$0xf]
    %v72 = vld [vmem:[%s0 + $0xc0] sm:$0xf]
    %v73 = vld [vmem:[%s0 + $0xc4] sm:$0xf]
    %v74 = vld [vmem:[%s0 + $0xc8] sm:$0xf]
    %v75 = vld [vmem:[%s0 + $0xcc] sm:$0xf]
    %v76 = vld [vmem:[%s0 + $0xd0] sm:$0xf]
    %v77 = vld [vmem:[%s0 + $0xd4] sm:$0xf]
    %v78 = vld [vmem:[%s0 + $0xd8] sm:$0xf]
    %v79 = vld [vmem:[%s0 + $0xdc] sm:$0xf]
    %v80 = vld [vmem:[%s0 + $0xe0] sm:$0xf]
    %v81 = vld [vmem:[%s0 + $0xe4] sm:$0xf]
    %v82 = vld [vmem:[%s0 + $0xe8] sm:$0xf]
    %v83 = vld [vmem:[%s0 + $0xec] sm:$0xf]
    %v84 = vld [vmem:[%s0 + $0xf0] sm:$0xf]
    %v85 = vld [vmem:[%s0 + $0xf4] sm:$0xf]
    %v86 = vld [vmem:[%s0 + $0xf8] sm:$0xf]
    %v87 = vld [vmem:[%s0 + $0xfc] sm:$0xf]
    %v88 = vld [vmem:[%s1] sm:$0xf]
    %v89 = vld [vmem:[%s1 + $0x4] sm:$0xf]
    %v90 = vld [vmem:[%s1 + $0x8] sm:$0xf]
    %v91 = vld [vmem:[%s1 + $0xc] sm:$0xf]
    %v92 = vld [vmem:[%s1 + $0x10] sm:$0x7]
    %v157 = vunpack.c.l.b16 %v24
    %v158 = vunpack.c.l.b16 %v25
    %v159 = vunpack.c.l.b16 %v26
    %v160 = vunpack.c.l.b16 %v27
    %v161 = vunpack.c.l.b16 %v28
    %v162 = vunpack.c.l.b16 %v29
    %v163 = vunpack.c.l.b16 %v30
    %v164 = vunpack.c.l.b16 %v31
    %v165 = vunpack.c.l.b16 %v32
    %v166 = vunpack.c.l.b16 %v33
    %v167 = vunpack.c.l.b16 %v34
    %v168 = vunpack.c.l.b16 %v35
    %v169 = vunpack.c.l.b16 %v36
    %v170 = vunpack.c.l.b16 %v37
    %v171 = vunpack.c.l.b16 %v38
    %v172 = vunpack.c.l.b16 %v39
    %v173 = vunpack.c.l.b16 %v40
    %v174 = vunpack.c.l.b16 %v41
    %v175 = vunpack.c.l.b16 %v42
    %v176 = vunpack.c.l.b16 %v43
    %v177 = vunpack.c.l.b16 %v44
    %v178 = vunpack.c.l.b16 %v45
    %v179 = vunpack.c.l.b16 %v46
    %v180 = vunpack.c.l.b16 %v47
    %v181 = vunpack.c.l.b16 %v48
    %v182 = vunpack.c.l.b16 %v49
    %v183 = vunpack.c.l.b16 %v50
    %v184 = vunpack.c.l.b16 %v51
    %v185 = vunpack.c.l.b16 %v52
    %v186 = vunpack.c.l.b16 %v53
    %v187 = vunpack.c.l.b16 %v54
    %v188 = vunpack.c.l.b16 %v55
    %v189 = vunpack.c.l.b16 %v56
    %v190 = vunpack.c.l.b16 %v57
    %v191 = vunpack.c.l.b16 %v58
    %v192 = vunpack.c.l.b16 %v59
    %v193 = vunpack.c.l.b16 %v60
    %v194 = vunpack.c.l.b16 %v61
    %v195 = vunpack.c.l.b16 %v62
    %v196 = vunpack.c.l.b16 %v63
    %v197 = vunpack.c.l.b16 %v64
    %v198 = vunpack.c.l.b16 %v65
    %v199 = vunpack.c.l.b16 %v66
    %v200 = vunpack.c.l.b16 %v67
    %v201 = vunpack.c.l.b16 %v68
    %v202 = vunpack.c.l.b16 %v69
    %v203 = vunpack.c.l.b16 %v70
    %v204 = vunpack.c.l.b16 %v71
    %v205 = vunpack.c.l.b16 %v72
    %v206 = vunpack.c.l.b16 %v73
    %v207 = vunpack.c.l.b16 %v74
    %v208 = vunpack.c.l.b16 %v75
    %v209 = vunpack.c.l.b16 %v76
    %v210 = vunpack.c.l.b16 %v77
    %v211 = vunpack.c.l.b16 %v78
    %v212 = vunpack.c.l.b16 %v79
    %v213 = vunpack.c.l.b16 %v80
    %v214 = vunpack.c.l.b16 %v81
    %v215 = vunpack.c.l.b16 %v82
    %v216 = vunpack.c.l.b16 %v83
    %v217 = vunpack.c.l.b16 %v84
    %v218 = vunpack.c.l.b16 %v85
    %v219 = vunpack.c.l.b16 %v86
    %v220 = vunpack.c.l.b16 %v87
    %v221 = vpack.c.b16 %v158, %v157
    %v222 = vpack.c.b16 %v160, %v159
    %v223 = vpack.c.b16 %v162, %v161
    %v224 = vpack.c.b16 %v164, %v163
    %v225 = vpack.c.b16 %v166, %v165
    %v226 = vpack.c.b16 %v168, %v167
    %v227 = vpack.c.b16 %v170, %v169
    %v228 = vpack.c.b16 %v172, %v171
    %v229 = vpack.c.b16 %v174, %v173
    %v230 = vpack.c.b16 %v176, %v175
    %v231 = vpack.c.b16 %v178, %v177
    %v232 = vpack.c.b16 %v180, %v179
    %v233 = vpack.c.b16 %v182, %v181
    %v234 = vpack.c.b16 %v184, %v183
    %v235 = vpack.c.b16 %v186, %v185
    %v236 = vpack.c.b16 %v188, %v187
    %v237 = vpack.c.b16 %v190, %v189
    %v238 = vpack.c.b16 %v192, %v191
    %v239 = vpack.c.b16 %v194, %v193
    %v240 = vpack.c.b16 %v196, %v195
    %v241 = vpack.c.b16 %v198, %v197
    %v242 = vpack.c.b16 %v200, %v199
    %v243 = vpack.c.b16 %v202, %v201
    %v244 = vpack.c.b16 %v204, %v203
    %v245 = vpack.c.b16 %v206, %v205
    %v246 = vpack.c.b16 %v208, %v207
    %v247 = vpack.c.b16 %v210, %v209
    %v248 = vpack.c.b16 %v212, %v211
    %v249 = vpack.c.b16 %v214, %v213
    %v250 = vpack.c.b16 %v216, %v215
    %v251 = vpack.c.b16 %v218, %v217
    %v252 = vpack.c.b16 %v220, %v219
    %v258 = vunpack.c.l.b16 %v88
    %v259 = vunpack.c.l.b16 %v89
    %v260 = vunpack.c.l.b16 %v90
    %v261 = vunpack.c.l.b16 %v91
    %v262 = vunpack.c.l.b16 %v92
    %v263 = vpack.c.b16 %v259, %v258
    %v264 = vpack.c.b16 %v261, %v260
    %v265 = vpack.c.b16 %v262, %v262
    %vm268 = vcmask 302080
    %v270 = vsel %vm268, %v221, 0
    %v273 = vsel %vm268, %v222, 0
    %v276 = vsel %vm268, %v223, 0
    %v279 = vsel %vm268, %v224, 0
    %v282 = vsel %vm268, %v225, 0
    %v285 = vsel %vm268, %v226, 0
    %v288 = vsel %vm268, %v227, 0
    %v291 = vsel %vm268, %v228, 0
    %v294 = vsel %vm268, %v229, 0
    %v297 = vsel %vm268, %v230, 0
    %v300 = vsel %vm268, %v231, 0
    %v303 = vsel %vm268, %v232, 0
    %v306 = vsel %vm268, %v233, 0
    %v309 = vsel %vm268, %v234, 0
    %v312 = vsel %vm268, %v235, 0
    %v315 = vsel %vm268, %v236, 0
    %v318 = vsel %vm268, %v237, 0
    %v321 = vsel %vm268, %v238, 0
    %v324 = vsel %vm268, %v239, 0
    %v327 = vsel %vm268, %v240, 0
    %v330 = vsel %vm268, %v241, 0
    %v333 = vsel %vm268, %v242, 0
    %v336 = vsel %vm268, %v243, 0
    %v339 = vsel %vm268, %v244, 0
    %v342 = vsel %vm268, %v245, 0
    %v345 = vsel %vm268, %v246, 0
    %v348 = vsel %vm268, %v247, 0
    %v351 = vsel %vm268, %v248, 0
    %v354 = vsel %vm268, %v249, 0
    %v357 = vsel %vm268, %v250, 0
    %v360 = vsel %vm268, %v251, 0
    %v363 = vsel %vm268, %v252, 0
    %vm365 = vcmask 1041408
    %vm366 = vcmask 1042432
    %v367 = vsel %vm365, 4294967295, 65535
    %v368 = vsel %vm366, %v367, 0
    %v370 = vand.u32 %v265, %v368
    %372 = vmatprep.subr.bf16.mxu0 0
    %373 = vmatpush1.bf16.msra.mxu0 0
    %374 = vmatprep.subr.bf16.mxu0 0
    %375 = vmatpush1.bf16.msra.mxu0 0
    %376 = vmatprep.subr.bf16.mxu0 0
    %377 = vmatpush1.bf16.msra.mxu0 0
    %378 = vmatprep.subr.bf16.mxu0 0
    %379 = vmatpush1.bf16.msra.mxu0 0
    %380 = vmatprep.subr.bf16.mxu0 0
    %381 = vmatpush1.bf16.msra.mxu0 0
    %382 = vmatprep.subr.bf16.mxu0 0
    %383 = vmatpush1.bf16.msra.mxu0 %v370
    %384 = vmatprep.subr.bf16.mxu0 0
    %385 = vmatpush1.bf16.msra.mxu0 %v264
    %386 = vmatprep.subr.bf16.mxu0 0
    %387 = vmatpush1.bf16.msra.mxu0 %v263
    %388 = vmatprep.subr.bf16.mxu0 0
    %389 = vmatpush2.bf16.msra.mxu0 0
    %390 = vmatprep.subr.bf16.mxu0 0
    %391 = vmatpush2.bf16.msra.mxu0 0
    %392 = vmatprep.subr.bf16.mxu0 0
    %393 = vmatpush2.bf16.msra.mxu0 0
    %394 = vmatprep.subr.bf16.mxu0 0
    %395 = vmatpush2.bf16.msra.mxu0 0
    %396 = vmatprep.subr.bf16.mxu0 0
    %397 = vmatpush2.bf16.msra.mxu0 0
    %398 = vmatprep.subr.bf16.mxu0 0
    %399 = vmatpush2.bf16.msra.mxu0 0
    %400 = vmatprep.subr.bf16.mxu0 0
    %401 = vmatpush2.bf16.msra.mxu0 0
    %402 = vmatprep.subr.bf16.mxu0 0
    %403 = vmatpush2.bf16.msra.mxu0 0
    %404 = vmatprep.mubr.bf16.mxu0 0
    %405 = vmatmul.mubr.bf16.gmra.mxu0 %v270
    %v406 = vpop.f32.mrf.mxu0
    %v407 = vadd.f32 0.0, %v406
    %v408 = vpop.f32.mrf.mxu0
    %v409 = vpop.f32.mrf.mxu0
    %v410 = vadd.f32 0.0, %v409
    %v411 = vpop.f32.mrf.mxu0
    %412 = vmatprep.mubr.bf16.mxu0 0
    %413 = vmatmul.mubr.bf16.gmra.mxu0 %v273
    %v414 = vpop.f32.mrf.mxu0
    %v415 = vadd.f32 0.0, %v414
    %v416 = vpop.f32.mrf.mxu0
    %v417 = vpop.f32.mrf.mxu0
    %v418 = vadd.f32 0.0, %v417
    %v419 = vpop.f32.mrf.mxu0
    %420 = vmatprep.mubr.bf16.mxu0 0
    %421 = vmatmul.mubr.bf16.gmra.mxu0 %v276
    %v422 = vpop.f32.mrf.mxu0
    %v423 = vadd.f32 0.0, %v422
    %v424 = vpop.f32.mrf.mxu0
    %v425 = vpop.f32.mrf.mxu0
    %v426 = vadd.f32 0.0, %v425
    %v427 = vpop.f32.mrf.mxu0
    %428 = vmatprep.mubr.bf16.mxu0 0
    %429 = vmatmul.mubr.bf16.gmra.mxu0 %v279
    %v430 = vpop.f32.mrf.mxu0
    %v431 = vadd.f32 0.0, %v430
    %v432 = vpop.f32.mrf.mxu0
    %v433 = vpop.f32.mrf.mxu0
    %v434 = vadd.f32 0.0, %v433
    %v435 = vpop.f32.mrf.mxu0
    %436 = vmatprep.mubr.bf16.mxu0 0
    %437 = vmatmul.mubr.bf16.gmra.mxu0 %v282
    %v438 = vpop.f32.mrf.mxu0
    %v439 = vadd.f32 0.0, %v438
    %v440 = vpop.f32.mrf.mxu0
    %v441 = vpop.f32.mrf.mxu0
    %v442 = vadd.f32 0.0, %v441
    %v443 = vpop.f32.mrf.mxu0
    %444 = vmatprep.mubr.bf16.mxu0 0
    %445 = vmatmul.mubr.bf16.gmra.mxu0 %v285
    %v446 = vpop.f32.mrf.mxu0
    %v447 = vadd.f32 0.0, %v446
    %v448 = vpop.f32.mrf.mxu0
    %v449 = vpop.f32.mrf.mxu0
    %v450 = vadd.f32 0.0, %v449
    %v451 = vpop.f32.mrf.mxu0
    %452 = vmatprep.mubr.bf16.mxu0 0
    %453 = vmatmul.mubr.bf16.gmra.mxu0 %v288
    %v454 = vpop.f32.mrf.mxu0
    %v455 = vadd.f32 0.0, %v454
    %v456 = vpop.f32.mrf.mxu0
    %v457 = vpop.f32.mrf.mxu0
    %v458 = vadd.f32 0.0, %v457
    %v459 = vpop.f32.mrf.mxu0
    %460 = vmatprep.mubr.bf16.mxu0 0
    %461 = vmatmul.mubr.bf16.gmra.mxu0 %v291
    %v462 = vpop.f32.mrf.mxu0
    %v463 = vadd.f32 0.0, %v462
    %v464 = vpop.f32.mrf.mxu0
    %v465 = vpop.f32.mrf.mxu0
    %v466 = vadd.f32 0.0, %v465
    %v467 = vpop.f32.mrf.mxu0
    %468 = vmatprep.mubr.bf16.mxu0 0
    %469 = vmatmul.mubr.bf16.gmra.mxu0 %v294
    %v470 = vpop.f32.mrf.mxu0
    %v471 = vadd.f32 0.0, %v470
    %v472 = vpop.f32.mrf.mxu0
    %v473 = vpop.f32.mrf.mxu0
    %v474 = vadd.f32 0.0, %v473
    %v475 = vpop.f32.mrf.mxu0
    %476 = vmatprep.mubr.bf16.mxu0 0
    %477 = vmatmul.mubr.bf16.gmra.mxu0 %v297
    %v478 = vpop.f32.mrf.mxu0
    %v479 = vadd.f32 0.0, %v478
    %v480 = vpop.f32.mrf.mxu0
    %v481 = vpop.f32.mrf.mxu0
    %v482 = vadd.f32 0.0, %v481
    %v483 = vpop.f32.mrf.mxu0
    %484 = vmatprep.mubr.bf16.mxu0 0
    %485 = vmatmul.mubr.bf16.gmra.mxu0 %v300
    %v486 = vpop.f32.mrf.mxu0
    %v487 = vadd.f32 0.0, %v486
    %v488 = vpop.f32.mrf.mxu0
    %v489 = vpop.f32.mrf.mxu0
    %v490 = vadd.f32 0.0, %v489
    %v491 = vpop.f32.mrf.mxu0
    %492 = vmatprep.mubr.bf16.mxu0 0
    %493 = vmatmul.mubr.bf16.gmra.mxu0 %v303
    %v494 = vpop.f32.mrf.mxu0
    %v495 = vadd.f32 0.0, %v494
    %v496 = vpop.f32.mrf.mxu0
    %v497 = vpop.f32.mrf.mxu0
    %v498 = vadd.f32 0.0, %v497
    %v499 = vpop.f32.mrf.mxu0
    %500 = vmatprep.mubr.bf16.mxu0 0
    %501 = vmatmul.mubr.bf16.gmra.mxu0 %v306
    %v502 = vpop.f32.mrf.mxu0
    %v503 = vadd.f32 0.0, %v502
    %v504 = vpop.f32.mrf.mxu0
    %v505 = vpop.f32.mrf.mxu0
    %v506 = vadd.f32 0.0, %v505
    %v507 = vpop.f32.mrf.mxu0
    %508 = vmatprep.mubr.bf16.mxu0 0
    %509 = vmatmul.mubr.bf16.gmra.mxu0 %v309
    %v510 = vpop.f32.mrf.mxu0
    %v511 = vadd.f32 0.0, %v510
    %v512 = vpop.f32.mrf.mxu0
    %v513 = vpop.f32.mrf.mxu0
    %v514 = vadd.f32 0.0, %v513
    %v515 = vpop.f32.mrf.mxu0
    %516 = vmatprep.mubr.bf16.mxu0 0
    %517 = vmatmul.mubr.bf16.gmra.mxu0 %v312
    %v518 = vpop.f32.mrf.mxu0
    %v519 = vadd.f32 0.0, %v518
    %v520 = vpop.f32.mrf.mxu0
    %v521 = vpop.f32.mrf.mxu0
    %v522 = vadd.f32 0.0, %v521
    %v523 = vpop.f32.mrf.mxu0
    %524 = vmatprep.mubr.bf16.mxu0 0
    %525 = vmatmul.mubr.bf16.gmra.mxu0 %v315
    %v526 = vpop.f32.mrf.mxu0
    %v527 = vadd.f32 0.0, %v526
    %v528 = vpop.f32.mrf.mxu0
    %v529 = vpop.f32.mrf.mxu0
    %v530 = vadd.f32 0.0, %v529
    %v531 = vpop.f32.mrf.mxu0
    %532 = vmatprep.mubr.bf16.mxu0 0
    %533 = vmatmul.mubr.bf16.gmra.mxu0 %v318
    %v534 = vpop.f32.mrf.mxu0
    %v535 = vadd.f32 0.0, %v534
    %v536 = vpop.f32.mrf.mxu0
    %v537 = vpop.f32.mrf.mxu0
    %v538 = vadd.f32 0.0, %v537
    %v539 = vpop.f32.mrf.mxu0
    %540 = vmatprep.mubr.bf16.mxu0 0
    %541 = vmatmul.mubr.bf16.gmra.mxu0 %v321
    %v542 = vpop.f32.mrf.mxu0
    %v543 = vadd.f32 0.0, %v542
    %v544 = vpop.f32.mrf.mxu0
    %v545 = vpop.f32.mrf.mxu0
    %v546 = vadd.f32 0.0, %v545
    %v547 = vpop.f32.mrf.mxu0
    %548 = vmatprep.mubr.bf16.mxu0 0
    %549 = vmatmul.mubr.bf16.gmra.mxu0 %v324
    %v550 = vpop.f32.mrf.mxu0
    %v551 = vadd.f32 0.0, %v550
    %v552 = vpop.f32.mrf.mxu0
    %v553 = vpop.f32.mrf.mxu0
    %v554 = vadd.f32 0.0, %v553
    %v555 = vpop.f32.mrf.mxu0
    %556 = vmatprep.mubr.bf16.mxu0 0
    %557 = vmatmul.mubr.bf16.gmra.mxu0 %v327
    %v558 = vpop.f32.mrf.mxu0
    %v559 = vadd.f32 0.0, %v558
    %v560 = vpop.f32.mrf.mxu0
    %v561 = vpop.f32.mrf.mxu0
    %v562 = vadd.f32 0.0, %v561
    %v563 = vpop.f32.mrf.mxu0
    %564 = vmatprep.mubr.bf16.mxu0 0
    %565 = vmatmul.mubr.bf16.gmra.mxu0 %v330
    %v566 = vpop.f32.mrf.mxu0
    %v567 = vadd.f32 0.0, %v566
    %v568 = vpop.f32.mrf.mxu0
    %v569 = vpop.f32.mrf.mxu0
    %v570 = vadd.f32 0.0, %v569
    %v571 = vpop.f32.mrf.mxu0
    %572 = vmatprep.mubr.bf16.mxu0 0
    %573 = vmatmul.mubr.bf16.gmra.mxu0 %v333
    %v574 = vpop.f32.mrf.mxu0
    %v575 = vadd.f32 0.0, %v574
    %v576 = vpop.f32.mrf.mxu0
    %v577 = vpop.f32.mrf.mxu0
    %v578 = vadd.f32 0.0, %v577
    %v579 = vpop.f32.mrf.mxu0
    %580 = vmatprep.mubr.bf16.mxu0 0
    %581 = vmatmul.mubr.bf16.gmra.mxu0 %v336
    %v582 = vpop.f32.mrf.mxu0
    %v583 = vadd.f32 0.0, %v582
    %v584 = vpop.f32.mrf.mxu0
    %v585 = vpop.f32.mrf.mxu0
    %v586 = vadd.f32 0.0, %v585
    %v587 = vpop.f32.mrf.mxu0
    %588 = vmatprep.mubr.bf16.mxu0 0
    %589 = vmatmul.mubr.bf16.gmra.mxu0 %v339
    %v590 = vpop.f32.mrf.mxu0
    %v591 = vadd.f32 0.0, %v590
    %v592 = vpop.f32.mrf.mxu0
    %v593 = vpop.f32.mrf.mxu0
    %v594 = vadd.f32 0.0, %v593
    %v595 = vpop.f32.mrf.mxu0
    %596 = vmatprep.mubr.bf16.mxu0 0
    %597 = vmatmul.mubr.bf16.gmra.mxu0 %v342
    %v598 = vpop.f32.mrf.mxu0
    %v599 = vadd.f32 0.0, %v598
    %v600 = vpop.f32.mrf.mxu0
    %v601 = vpop.f32.mrf.mxu0
    %v602 = vadd.f32 0.0, %v601
    %v603 = vpop.f32.mrf.mxu0
    %604 = vmatprep.mubr.bf16.mxu0 0
    %605 = vmatmul.mubr.bf16.gmra.mxu0 %v345
    %v606 = vpop.f32.mrf.mxu0
    %v607 = vadd.f32 0.0, %v606
    %v608 = vpop.f32.mrf.mxu0
    %v609 = vpop.f32.mrf.mxu0
    %v610 = vadd.f32 0.0, %v609
    %v611 = vpop.f32.mrf.mxu0
    %612 = vmatprep.mubr.bf16.mxu0 0
    %613 = vmatmul.mubr.bf16.gmra.mxu0 %v348
    %v614 = vpop.f32.mrf.mxu0
    %v615 = vadd.f32 0.0, %v614
    %v616 = vpop.f32.mrf.mxu0
    %v617 = vpop.f32.mrf.mxu0
    %v618 = vadd.f32 0.0, %v617
    %v619 = vpop.f32.mrf.mxu0
    %620 = vmatprep.mubr.bf16.mxu0 0
    %621 = vmatmul.mubr.bf16.gmra.mxu0 %v351
    %v622 = vpop.f32.mrf.mxu0
    %v623 = vadd.f32 0.0, %v622
    %v624 = vpop.f32.mrf.mxu0
    %v625 = vpop.f32.mrf.mxu0
    %v626 = vadd.f32 0.0, %v625
    %v627 = vpop.f32.mrf.mxu0
    %628 = vmatprep.mubr.bf16.mxu0 0
    %629 = vmatmul.mubr.bf16.gmra.mxu0 %v354
    %v630 = vpop.f32.mrf.mxu0
    %v631 = vadd.f32 0.0, %v630
    %v632 = vpop.f32.mrf.mxu0
    %v633 = vpop.f32.mrf.mxu0
    %v634 = vadd.f32 0.0, %v633
    %v635 = vpop.f32.mrf.mxu0
    %636 = vmatprep.mubr.bf16.mxu0 0
    %637 = vmatmul.mubr.bf16.gmra.mxu0 %v357
    %v638 = vpop.f32.mrf.mxu0
    %v639 = vadd.f32 0.0, %v638
    %v640 = vpop.f32.mrf.mxu0
    %v641 = vpop.f32.mrf.mxu0
    %v642 = vadd.f32 0.0, %v641
    %v643 = vpop.f32.mrf.mxu0
    %644 = vmatprep.mubr.bf16.mxu0 0
    %645 = vmatmul.mubr.bf16.gmra.mxu0 %v360
    %v646 = vpop.f32.mrf.mxu0
    %v647 = vadd.f32 0.0, %v646
    %v648 = vpop.f32.mrf.mxu0
    %v649 = vpop.f32.mrf.mxu0
    %v650 = vadd.f32 0.0, %v649
    %v651 = vpop.f32.mrf.mxu0
    %652 = vmatprep.mubr.bf16.mxu0 0
    %653 = vmatmul.mubr.bf16.gmra.mxu0 %v363
    %v654 = vpop.f32.mrf.mxu0
    %v655 = vadd.f32 0.0, %v654
    %v656 = vpop.f32.mrf.mxu0
    %v657 = vpop.f32.mrf.mxu0
    %v658 = vadd.f32 0.0, %v657
    %v659 = vpop.f32.mrf.mxu0
    %660 = vdwg.mxu0
    %v661 = vmax.f32 %v407, 0.0
    %v662 = vmax.f32 %v410, 0.0
    %v663 = vmax.f32 %v415, 0.0
    %v664 = vmax.f32 %v418, 0.0
    %v665 = vmax.f32 %v423, 0.0
    %v666 = vmax.f32 %v426, 0.0
    %v667 = vmax.f32 %v431, 0.0
    %v668 = vmax.f32 %v434, 0.0
    %v669 = vmax.f32 %v439, 0.0
    %v670 = vmax.f32 %v442, 0.0
    %v671 = vmax.f32 %v447, 0.0
    %v672 = vmax.f32 %v450, 0.0
    %v673 = vmax.f32 %v455, 0.0
    %v674 = vmax.f32 %v458, 0.0
    %v675 = vmax.f32 %v463, 0.0
    %v676 = vmax.f32 %v466, 0.0
    %v677 = vmax.f32 %v471, 0.0
    %v678 = vmax.f32 %v474, 0.0
    %v679 = vmax.f32 %v479, 0.0
    %v680 = vmax.f32 %v482, 0.0
    %v681 = vmax.f32 %v487, 0.0
    %v682 = vmax.f32 %v490, 0.0
    %v683 = vmax.f32 %v495, 0.0
    %v684 = vmax.f32 %v498, 0.0
    %v685 = vmax.f32 %v503, 0.0
    %v686 = vmax.f32 %v506, 0.0
    %v687 = vmax.f32 %v511, 0.0
    %v688 = vmax.f32 %v514, 0.0
    %v689 = vmax.f32 %v519, 0.0
    %v690 = vmax.f32 %v522, 0.0
    %v691 = vmax.f32 %v527, 0.0
    %v692 = vmax.f32 %v530, 0.0
    %v693 = vmax.f32 %v535, 0.0
    %v694 = vmax.f32 %v538, 0.0
    %v695 = vmax.f32 %v543, 0.0
    %v696 = vmax.f32 %v546, 0.0
    %v697 = vmax.f32 %v551, 0.0
    %v698 = vmax.f32 %v554, 0.0
    %v699 = vmax.f32 %v559, 0.0
    %v700 = vmax.f32 %v562, 0.0
    %v701 = vmax.f32 %v567, 0.0
    %v702 = vmax.f32 %v570, 0.0
    %v703 = vmax.f32 %v575, 0.0
    %v704 = vmax.f32 %v578, 0.0
    %v705 = vmax.f32 %v583, 0.0
    %v706 = vmax.f32 %v586, 0.0
    %v707 = vmax.f32 %v591, 0.0
    %v708 = vmax.f32 %v594, 0.0
    %v709 = vmax.f32 %v599, 0.0
    %v710 = vmax.f32 %v602, 0.0
    %v711 = vmax.f32 %v607, 0.0
    %v712 = vmax.f32 %v610, 0.0
    %v713 = vmax.f32 %v615, 0.0
    %v714 = vmax.f32 %v618, 0.0
    %v715 = vmax.f32 %v623, 0.0
    %v716 = vmax.f32 %v626, 0.0
    %v717 = vmax.f32 %v631, 0.0
    %v718 = vmax.f32 %v634, 0.0
    %v719 = vmax.f32 %v639, 0.0
    %v720 = vmax.f32 %v642, 0.0
    %v721 = vmax.f32 %v647, 0.0
    %v722 = vmax.f32 %v650, 0.0
    %v723 = vmax.f32 %v655, 0.0
    %v724 = vmax.f32 %v658, 0.0
    %v725 = vld [vmem:[#allocation2] sm:$0x3]
    %v726 = vadd.f32 %v661, %v662
    %v727 = vadd.f32 %v726, %v663
    %v728 = vadd.f32 %v727, %v664
    %v729 = vadd.f32 %v728, %v665
    %v730 = vadd.f32 %v729, %v666
    %v731 = vadd.f32 %v730, %v667
    %v732 = vadd.f32 %v731, %v668
    %v733 = vadd.f32 %v732, %v669
    %v734 = vadd.f32 %v733, %v670
    %v735 = vadd.f32 %v734, %v671
    %v736 = vadd.f32 %v735, %v672
    %v737 = vadd.f32 %v736, %v673
    %v738 = vadd.f32 %v737, %v674
    %v739 = vadd.f32 %v738, %v675
    %v740 = vadd.f32 %v739, %v676
    %v741 = vadd.f32 %v740, %v677
    %v742 = vadd.f32 %v741, %v678
    %v743 = vadd.f32 %v742, %v679
    %v744 = vadd.f32 %v743, %v680
    %v745 = vadd.f32 %v744, %v681
    %v746 = vadd.f32 %v745, %v682
    %v747 = vadd.f32 %v746, %v683
    %v748 = vadd.f32 %v747, %v684
    %v749 = vadd.f32 %v748, %v685
    %v750 = vadd.f32 %v749, %v686
    %v751 = vadd.f32 %v750, %v687
    %v752 = vadd.f32 %v751, %v688
    %v753 = vadd.f32 %v752, %v689
    %v754 = vadd.f32 %v753, %v690
    %v755 = vadd.f32 %v754, %v691
    %v756 = vadd.f32 %v755, %v692
    %v757 = vrot.slane %v756, 4
    %v758 = vadd.f32 %v756, %v757
    %v759 = vrot.slane %v758, 2
    %v760 = vadd.f32 %v758, %v759
    %v761 = vrot.slane %v760, 1
    %v762 = vadd.f32 %v760, %v761
    %v763 = vadd.f32 %v693, %v694
    %v764 = vadd.f32 %v763, %v695
    %v765 = vadd.f32 %v764, %v696
    %v766 = vadd.f32 %v765, %v697
    %v767 = vadd.f32 %v766, %v698
    %v768 = vadd.f32 %v767, %v699
    %v769 = vadd.f32 %v768, %v700
    %v770 = vadd.f32 %v769, %v701
    %v771 = vadd.f32 %v770, %v702
    %v772 = vadd.f32 %v771, %v703
    %v773 = vadd.f32 %v772, %v704
    %v774 = vadd.f32 %v773, %v705
    %v775 = vadd.f32 %v774, %v706
    %v776 = vadd.f32 %v775, %v707
    %v777 = vadd.f32 %v776, %v708
    %v778 = vadd.f32 %v777, %v709
    %v779 = vadd.f32 %v778, %v710
    %v780 = vadd.f32 %v779, %v711
    %v781 = vadd.f32 %v780, %v712
    %v782 = vadd.f32 %v781, %v713
    %v783 = vadd.f32 %v782, %v714
    %v784 = vadd.f32 %v783, %v715
    %v785 = vadd.f32 %v784, %v716
    %v786 = vadd.f32 %v785, %v717
    %v787 = vadd.f32 %v786, %v718
    %v788 = vadd.f32 %v787, %v719
    %v789 = vadd.f32 %v788, %v720
    %v790 = vadd.f32 %v789, %v721
    %v791 = vadd.f32 %v790, %v722
    %v792 = vadd.f32 %v791, %v723
    %v793 = vadd.f32 %v792, %v724
    %v794 = vrot.slane %v793, 4
    %v795 = vadd.f32 %v793, %v794
    %v796 = vrot.slane %v795, 2
    %v797 = vadd.f32 %v795, %v796
    %v798 = vrot.slane %v797, 1
    %v799 = vadd.f32 %v797, %v798
    %vm802 = vcmask 1041409
    %v803 = vsel %vm802, %v799, %v762
    %v805 = vadd.f32 %v725, %v803
    %806 = vst [vmem:[#allocation2] sm:$0x3] %v805
    // Predicated region
    $region22: #{feature_extraction_backbone.1} parent=1 // pred_check
      %p807 = pneg %p19
    $region23: #{feature_extraction_backbone.1} parent=1 // pred_check_branch
      %809 = sbr.rel (%p807) target = $region25
    $region24: #{feature_extraction_backbone.1} parent=1 // pred_region
      %v810 = vld [vmem:[#allocation2] sm:$0x3]
      %v811 = vmul.f32 %v810, 0.00390625
      %v812 = vpack.c.bf16 %v811, %v811
      %v813 = vld [vmem:[%s2] sm:$0xf]
      %v814 = vld [vmem:[%s2 + $0x4] sm:$0xf]
      %v815 = vld [vmem:[%s2 + $0x8] sm:$0xf]
      %v816 = vld [vmem:[%s2 + $0xc] sm:$0xf]
      %v817 = vld [vmem:[%s2 + $0x10] sm:$0xf]
      %v818 = vld [vmem:[%s2 + $0x14] sm:$0xf]
      %v819 = vld [vmem:[%s2 + $0x18] sm:$0xf]
      %v820 = vld [vmem:[%s2 + $0x1c] sm:$0xf]
      %v821 = vld [vmem:[%s2 + $0x20] sm:$0xf]
      %v822 = vld [vmem:[%s2 + $0x24] sm:$0xf]
      %v823 = vld [vmem:[%s2 + $0x28] sm:$0xf]
      %v824 = vld [vmem:[%s2 + $0x2c] sm:$0xf]
      %v825 = vld [vmem:[%s2 + $0x30] sm:$0xf]
      %v826 = vld [vmem:[%s2 + $0x34] sm:$0xf]
      %v827 = vld [vmem:[%s2 + $0x38] sm:$0xf]
      %v828 = vld [vmem:[%s2 + $0x3c] sm:$0xf]
      %v829 = vld [vmem:[%s3] sm:$0x1]
      %v831 = vlaneseq
      %v832 = vshrl.u32 %v831, 7
      %v833 = vsub.s32 0, %v832
      %v834 = vrot.slane %v829, %v833
      %v852 = vunpack.c.l.b16 %v813
      %v853 = vunpack.c.l.b16 %v814
      %v854 = vunpack.c.l.b16 %v815
      %v855 = vunpack.c.l.b16 %v816
      %v856 = vunpack.c.l.b16 %v817
      %v857 = vunpack.c.l.b16 %v818
      %v858 = vunpack.c.l.b16 %v819
      %v859 = vunpack.c.l.b16 %v820
      %v860 = vunpack.c.l.b16 %v821
      %v861 = vunpack.c.l.b16 %v822
      %v862 = vunpack.c.l.b16 %v823
      %v863 = vunpack.c.l.b16 %v824
      %v864 = vunpack.c.l.b16 %v825
      %v865 = vunpack.c.l.b16 %v826
      %v866 = vunpack.c.l.b16 %v827
      %v867 = vunpack.c.l.b16 %v828
      %v868 = vpack.c.b16 %v853, %v852
      %v869 = vpack.c.b16 %v855, %v854
      %v870 = vpack.c.b16 %v857, %v856
      %v871 = vpack.c.b16 %v859, %v858
      %v872 = vpack.c.b16 %v861, %v860
      %v873 = vpack.c.b16 %v863, %v862
      %v874 = vpack.c.b16 %v865, %v864
      %v875 = vpack.c.b16 %v867, %v866
      %884 = vmatprep.subr.bf16.mxu0 0
      %885 = vmatpush1.bf16.msra.mxu0 %v875
      %886 = vmatprep.subr.bf16.mxu0 0
      %887 = vmatpush1.bf16.msra.mxu0 %v874
      %888 = vmatprep.subr.bf16.mxu0 0
      %889 = vmatpush1.bf16.msra.mxu0 %v873
      %890 = vmatprep.subr.bf16.mxu0 0
      %891 = vmatpush1.bf16.msra.mxu0 %v872
      %892 = vmatprep.subr.bf16.mxu0 0
      %893 = vmatpush1.bf16.msra.mxu0 %v871
      %894 = vmatprep.subr.bf16.mxu0 0
      %895 = vmatpush1.bf16.msra.mxu0 %v870
      %896 = vmatprep.subr.bf16.mxu0 0
      %897 = vmatpush1.bf16.msra.mxu0 %v869
      %898 = vmatprep.subr.bf16.mxu0 0
      %899 = vmatpush1.bf16.msra.mxu0 %v868
      %900 = vmatprep.subr.bf16.mxu0 0
      %901 = vmatpush2.bf16.msra.mxu0 0
      %902 = vmatprep.subr.bf16.mxu0 0
      %903 = vmatpush2.bf16.msra.mxu0 0
      %904 = vmatprep.subr.bf16.mxu0 0
      %905 = vmatpush2.bf16.msra.mxu0 0
      %906 = vmatprep.subr.bf16.mxu0 0
      %907 = vmatpush2.bf16.msra.mxu0 0
      %908 = vmatprep.subr.bf16.mxu0 0
      %909 = vmatpush2.bf16.msra.mxu0 0
      %910 = vmatprep.subr.bf16.mxu0 0
      %911 = vmatpush2.bf16.msra.mxu0 0
      %912 = vmatprep.subr.bf16.mxu0 0
      %913 = vmatpush2.bf16.msra.mxu0 0
      %914 = vmatprep.subr.bf16.mxu0 0
      %915 = vmatpush2.bf16.msra.mxu0 0
      %916 = vmatprep.mubr.bf16.mxu0 0
      %917 = vmatmul.mubr.bf16.gmra.mxu0 %v812
      %v918 = vpop.f32.mrf.mxu0
      %v919 = vadd.f32 %v834, %v918
      %v920 = vpop.f32.mrf.mxu0
      %v921 = vpop.f32.mrf.mxu0
      %v922 = vpop.f32.mrf.mxu0
      %923 = vdwg.mxu0
      %924 = vst [vmem:[#allocation3] sm:$0x3] %v919
    $region25: #{feature_extraction_backbone.1} parent=1 // pred_fallthru
      _
    // Predicated region
    $region26: #{feature_extraction_backbone.1} parent=1 // pred_check
      _
    $region27: #{feature_extraction_backbone.1} parent=1 // pred_check_branch
      %926 = sbr.rel (0) target = $region29
    $region28: #{feature_extraction_backbone.1} parent=1 // pred_region
      %s928 = ssub.s32 32, 32
      %929 = vsyncadd [#allocation4], %s928
      %s931 = sshll.u32 [#allocation3], 4
      %s932 = int_to_ptr.vmem [resolvable:$true] %s931
      %934 = dma.vmem_to_hbm [thread:$0]  %s932, 32, %s4, [#allocation4]
    $region29: #{feature_extraction_backbone.1} parent=1 // pred_fallthru
      _
    // Predicated region
    $region30: #{feature_extraction_backbone.1} parent=1 // pred_check
      _
    $region31: #{feature_extraction_backbone.1} parent=1 // pred_check_branch
      %936 = sbr.rel (0) target = $region33
    $region32: #{feature_extraction_backbone.1} parent=1 // pred_region
      %937 = dma.done [#allocation4], 32
    $region33: #{feature_extraction_backbone.1} parent=1 // pred_fallthru
      _
    %938 = vsyncpa [#allocation4], 1

</llo_original>
